<compile_context>
chip_gen: v6e
topology: v6e:2x2x1
jax: 0.10.0
libtpu: 0.0.40
codegen_flags: <defaults>
</compile_context>

<pallas_src>
import functools
import math

import jax
import jax.numpy as jnp
from jax.experimental import pallas as pl
from jax.experimental.pallas import tpu as pltpu


def _criterion_kernel(s1_ref, s2_ref, out_ref, *,
                      tao, alpha, total_rows, num_classes, block_rows,
                      mask_tail):
    i = pl.program_id(0)

    s1 = s1_ref[...].astype(jnp.float32)
    s2 = s2_ref[...].astype(jnp.float32)

    # Single pass over the class axis: five per-row partial sums.       (TB,1)
    d_sum = jnp.sum(jnp.abs(s1 - s2), axis=1, keepdims=True)
    a1 = jnp.sum(s1, axis=1, keepdims=True)
    a2 = jnp.sum(s2, axis=1, keepdims=True)
    e1 = jnp.sum(s1 * jnp.log(s1), axis=1, keepdims=True)
    e2 = jnp.sum(s2 * jnp.log(s2), axis=1, keepdims=True)

    # loss = 1 - mean(|s1-s2|, dim=1)
    loss = 1.0 - d_sum * (1.0 / float(num_classes))

    # Folded entropy (exact algebra, one divide + one log per row):
    #   sum(p1*log2 p1 + p2*log2 p2) = (e1/a1 + e2/a2 - ln(a1*a2)) / ln2
    #                                = ((e1*a2 + e2*a1)/(a1*a2) - ln(a1*a2)) / ln2
    # (assumes row sums small enough that a1*a2 does not overflow f32, which
    #  holds for softmax-like scores).
    p = a1 * a2
    q = e1 * a2 + e2 * a1
    ent = (jnp.log(p) - q / p) * (0.5 / math.log(2.0))

    # loss_weight = sigmoid(ent - tao) / alpha, sigmoid via tanh (1 EUP op).
    lw = (0.5 + 0.5 * jnp.tanh(0.5 * (ent - tao))) * (1.0 / float(alpha))

    contrib = lw * loss                                              # (TB,1)

    if mask_tail:
        # Padded tail rows of the last tile hold pipeline garbage fed through
        # log(); the select (NOT a multiply) forces those rows to exactly 0.
        rows = i * block_rows + jax.lax.broadcasted_iota(
            jnp.int32, (block_rows, 1), 0)
        contrib = jnp.where(rows < total_rows, contrib, 0.0)

    # Per-tile partial sum, written to this tile's own lane-dense output
    # block (no loop-carried accumulator -> the grid axis is truly parallel).
    partial = jnp.sum(contrib)
    sub = jax.lax.broadcasted_iota(jnp.int32, (8, 128), 0)
    lane = jax.lax.broadcasted_iota(jnp.int32, (8, 128), 1)
    out_ref[...] = jnp.where((sub == 0) & (lane == 0), partial, 0.0)


def criterion_classifier(scores1, scores2, tao=0.1, alpha=128, block_rows=None):
    """Pallas TPU forward of criterion_classifier. Returns a scalar f32."""
    assert scores1.shape == scores2.shape and scores1.ndim == 2
    B, C = scores1.shape
    itemsize = jnp.dtype(scores1.dtype).itemsize

    # ---- per-generation tile / VMEM budget --------------------------------
    try:
        vmem_cap = int(pltpu.get_tpu_info().vmem_capacity_bytes)
    except Exception:
        vmem_cap = 0                      # unknown -> conservative (v7x-safe)
    if vmem_cap >= (100 << 20):           # v5e / v6e: 128 MiB physical VMEM
        target_tile_bytes = 8 << 20
        vmem_cap_limit = 64 << 20
    else:                                 # v7x (64 MiB physical) or unknown
        target_tile_bytes = 4 << 20
        vmem_cap_limit = 40 << 20

    if block_rows is None:
        rows_fit = max(8, target_tile_bytes // max(1, C * itemsize))
        if rows_fit >= 128:
            rows_fit = (rows_fit // 128) * 128   # multiple of 128: lane-friendly
        else:                                    # and covers bf16/int8 sublanes
            rows_fit = (rows_fit // 8) * 8
        TB = B if B <= rows_fit else int(rows_fit)
    else:
        TB = int(block_rows)
        assert TB == B or TB % 8 == 0, "block_rows must equal B or be a multiple of 8"

    num_tiles = pl.cdiv(B, TB)
    mask_tail = (B % TB) != 0             # static: skip masking when divisible

    kernel = functools.partial(
        _criterion_kernel,
        tao=float(tao), alpha=float(alpha),
        total_rows=B, num_classes=C, block_rows=TB, mask_tail=mask_tail)

    # 2 inputs x 2 pipeline buffers per tile + output + slack.
    tile_bytes = TB * C * itemsize
    vmem_bytes = int(min(vmem_cap_limit, max(16 << 20, 5 * tile_bytes + (2 << 20))))

    cost = pl.CostEstimate(
        flops=9 * B * C + 16 * B,
        transcendentals=2 * B * C + 4 * B,   # element logs + per-row log/div/tanh
        bytes_accessed=2 * B * C * itemsize + num_tiles * 8 * 128 * 4,
    )

    partials = pl.pallas_call(
        kernel,
        out_shape=jax.ShapeDtypeStruct((num_tiles * 8, 128), jnp.float32),
        grid=(num_tiles,),
        in_specs=[
            pl.BlockSpec((TB, C), lambda i: (i, 0)),
            pl.BlockSpec((TB, C), lambda i: (i, 0)),
        ],
        out_specs=pl.BlockSpec((8, 128), lambda i: (i, 0)),
        compiler_params=pltpu.CompilerParams(
            dimension_semantics=("parallel",),   # independent per-tile partials
            vmem_limit_bytes=vmem_bytes,
        ),
        cost_estimate=cost,
    )(scores1, scores2)

    # Tiny final reduction outside the kernel (num_tiles*1024 f32 values).
    return jnp.sum(partials) * (1.0 / float(B))


def _reference(scores1, scores2, tao=0.1, alpha=128):
    """Pure-JAX reference mirroring the PyTorch code, for verification."""
    s1 = scores1.astype(jnp.float32)
    s2 = scores2.astype(jnp.float32)
    loss = 1.0 - jnp.mean(jnp.abs(s1 - s2), axis=1)
    s1n = s1 / jnp.sum(s1, axis=1, keepdims=True)
    s2n = s2 / jnp.sum(s2, axis=1, keepdims=True)
    ent = -jnp.sum(s1n * jnp.log2(s1n) + s2n * jnp.log2(s2n), axis=1) / 2.0
    lw = jax.nn.sigmoid(ent - tao) / alpha
    return jnp.mean(lw * loss)


if __name__ == "__main__":
    # criterion_classifier has no learnable parameters; only tao / alpha
    # hyper-parameters (deterministic defaults tao=0.1, alpha=128).
    key = jax.random.PRNGKey(0)
    k1, k2, k3, k4, k5, k6 = jax.random.split(key, 6)

    # --- small single-tile case ---------------------------------------
    # Scores must be positive (row-normalized then fed through log2), so use
    # softmax-style positive inputs, as the model would produce.
    B, C = 8, 32
    scores1 = jax.nn.softmax(jax.random.normal(k1, (B, C), dtype=jnp.float32), axis=1)
    scores2 = jax.nn.softmax(jax.random.normal(k2, (B, C), dtype=jnp.float32), axis=1)
    result = jax.block_until_ready(criterion_classifier(scores1, scores2))
    ref = jax.block_until_ready(_reference(scores1, scores2))
    assert jnp.allclose(result, ref, rtol=1e-4, atol=1e-6), (result, ref)

    # --- multi-tile case with a ragged tail (exercises masking + partials) --
    B2, C2 = 20, 32
    s1b = jax.nn.softmax(jax.random.normal(k3, (B2, C2), dtype=jnp.float32), axis=1)
    s2b = jax.nn.softmax(jax.random.normal(k4, (B2, C2), dtype=jnp.float32), axis=1)
    result2 = jax.block_until_ready(criterion_classifier(s1b, s2b, block_rows=8))
    ref2 = jax.block_until_ready(_reference(s1b, s2b))
    assert jnp.allclose(result2, ref2, rtol=1e-4, atol=1e-6), (result2, ref2)

    # --- multi-tile case, exactly divisible (mask statically skipped) -------
    B3, C3 = 256, 32
    s1c = jax.nn.softmax(jax.random.normal(k5, (B3, C3), dtype=jnp.float32), axis=1)
    s2c = jax.nn.softmax(jax.random.normal(k6, (B3, C3), dtype=jnp.float32), axis=1)
    result3 = jax.block_until_ready(criterion_classifier(s1c, s2c, block_rows=128))
    ref3 = jax.block_until_ready(_reference(s1c, s2c))
    assert jnp.allclose(result3, ref3, rtol=1e-4, atol=1e-6), (result3, ref3)

    print("KERNEL_OK")
</pallas_src>

<mosaic_0001>
module attributes {stable_mosaic.version = 11 : i64} {
  func.func @_criterion_kernel(%arg0: i32, %arg1: memref<8x32xf32, #tpu.memory_space<vmem>>, %arg2: memref<8x32xf32, #tpu.memory_space<vmem>>, %arg3: memref<8x128xf32, #tpu.memory_space<vmem>>) attributes {dimension_semantics = [#tpu.dimension_semantics<parallel>], iteration_bounds = array<i64: 1>, scalar_prefetch = 0 : i64, scratch_operands = 0 : i64, tpu.core_type = #tpu.core_type<tc>, window_params = [{transform_indices = @transform_0, window_bounds = array<i64: 8, 32>}, {transform_indices = @transform_1, window_bounds = array<i64: 8, 32>}, {transform_indices = @transform_2, window_bounds = array<i64: 8, 128>}]} {
    %c0 = arith.constant 0 : index
    %c0_0 = arith.constant 0 : index
    %0 = vector.load %arg1[%c0, %c0_0] : memref<8x32xf32, #tpu.memory_space<vmem>>, vector<8x32xf32>
    %c0_1 = arith.constant 0 : index
    %c0_2 = arith.constant 0 : index
    %1 = vector.load %arg2[%c0_1, %c0_2] : memref<8x32xf32, #tpu.memory_space<vmem>>, vector<8x32xf32>
    %2 = arith.subf %0, %1 : vector<8x32xf32>
    %3 = math.absf %2 : vector<8x32xf32>
    %cst = arith.constant dense<0.000000e+00> : vector<8xf32>
    %4 = vector.multi_reduction <add>, %3, %cst [1] : vector<8x32xf32> to vector<8xf32>
    %5 = vector.shape_cast %4 : vector<8xf32> to vector<8x1xf32>
    %cst_3 = arith.constant dense<0.000000e+00> : vector<8xf32>
    %6 = vector.multi_reduction <add>, %0, %cst_3 [1] : vector<8x32xf32> to vector<8xf32>
    %7 = vector.shape_cast %6 : vector<8xf32> to vector<8x1xf32>
    %cst_4 = arith.constant dense<0.000000e+00> : vector<8xf32>
    %8 = vector.multi_reduction <add>, %1, %cst_4 [1] : vector<8x32xf32> to vector<8xf32>
    %9 = vector.shape_cast %8 : vector<8xf32> to vector<8x1xf32>
    %10 = math.log %0 : vector<8x32xf32>
    %11 = arith.mulf %0, %10 : vector<8x32xf32>
    %cst_5 = arith.constant dense<0.000000e+00> : vector<8xf32>
    %12 = vector.multi_reduction <add>, %11, %cst_5 [1] : vector<8x32xf32> to vector<8xf32>
    %13 = vector.shape_cast %12 : vector<8xf32> to vector<8x1xf32>
    %14 = math.log %1 : vector<8x32xf32>
    %15 = arith.mulf %1, %14 : vector<8x32xf32>
    %cst_6 = arith.constant dense<0.000000e+00> : vector<8xf32>
    %16 = vector.multi_reduction <add>, %15, %cst_6 [1] : vector<8x32xf32> to vector<8xf32>
    %17 = vector.shape_cast %16 : vector<8xf32> to vector<8x1xf32>
    %cst_7 = arith.constant 3.125000e-02 : f32
    %18 = vector.broadcast %cst_7 : f32 to vector<8x1xf32>
    %19 = arith.mulf %5, %18 : vector<8x1xf32>
    %cst_8 = arith.constant 1.000000e+00 : f32
    %20 = vector.broadcast %cst_8 : f32 to vector<8x1xf32>
    %21 = arith.subf %20, %19 : vector<8x1xf32>
    %22 = arith.mulf %7, %9 : vector<8x1xf32>
    %23 = arith.mulf %13, %9 : vector<8x1xf32>
    %24 = arith.mulf %17, %7 : vector<8x1xf32>
    %25 = arith.addf %23, %24 : vector<8x1xf32>
    %26 = math.log %22 : vector<8x1xf32>
    %27 = arith.divf %25, %22 : vector<8x1xf32>
    %28 = arith.subf %26, %27 : vector<8x1xf32>
    %cst_9 = arith.constant 0.72134751 : f32
    %29 = vector.broadcast %cst_9 : f32 to vector<8x1xf32>
    %30 = arith.mulf %28, %29 : vector<8x1xf32>
    %cst_10 = arith.constant 1.000000e-01 : f32
    %31 = vector.broadcast %cst_10 : f32 to vector<8x1xf32>
    %32 = arith.subf %30, %31 : vector<8x1xf32>
    %cst_11 = arith.constant 5.000000e-01 : f32
    %33 = vector.broadcast %cst_11 : f32 to vector<8x1xf32>
    %34 = arith.mulf %33, %32 : vector<8x1xf32>
    %35 = math.tanh %34 : vector<8x1xf32>
    %cst_12 = arith.constant 5.000000e-01 : f32
    %36 = vector.broadcast %cst_12 : f32 to vector<8x1xf32>
    %37 = arith.mulf %36, %35 : vector<8x1xf32>
    %cst_13 = arith.constant 5.000000e-01 : f32
    %38 = vector.broadcast %cst_13 : f32 to vector<8x1xf32>
    %39 = arith.addf %38, %37 : vector<8x1xf32>
    %cst_14 = arith.constant 7.812500e-03 : f32
    %40 = vector.broadcast %cst_14 : f32 to vector<8x1xf32>
    %41 = arith.mulf %39, %40 : vector<8x1xf32>
    %42 = arith.mulf %41, %21 : vector<8x1xf32>
    %43 = vector.shape_cast %42 : vector<8x1xf32> to vector<1x8x1xf32>
    %cst_15 = arith.constant dense<0.000000e+00> : vector<1xf32>
    %44 = vector.multi_reduction <add>, %43, %cst_15 [1, 2] : vector<1x8x1xf32> to vector<1xf32>
    %45 = vector.shape_cast %44 : vector<1xf32> to vector<1x1x1xf32>
    %46 = vector.extract %45[0, 0, 0] : f32 from vector<1x1x1xf32>
    %47 = tpu.iota {dimensions = array<i32: 0>} : vector<8x128xi32>
    %48 = tpu.iota {dimensions = array<i32: 1>} : vector<8x128xi32>
    %c0_i32 = arith.constant 0 : i32
    %49 = vector.broadcast %c0_i32 : i32 to vector<8x128xi32>
    %50 = arith.cmpi eq, %47, %49 : vector<8x128xi32>
    %c0_i32_16 = arith.constant 0 : i32
    %51 = vector.broadcast %c0_i32_16 : i32 to vector<8x128xi32>
    %52 = arith.cmpi eq, %48, %51 : vector<8x128xi32>
    %53 = arith.andi %50, %52 : vector<8x128xi1>
    %cst_17 = arith.constant 0.000000e+00 : f32
    %54 = vector.broadcast %46 : f32 to vector<8x128xf32>
    %55 = vector.broadcast %cst_17 : f32 to vector<8x128xf32>
    %56 = arith.select %53, %54, %55 : vector<8x128xi1>, vector<8x128xf32>
    %c0_18 = arith.constant 0 : index
    %c0_19 = arith.constant 0 : index
    %57 = vector.load %arg3[%c0_18, %c0_19] : memref<8x128xf32, #tpu.memory_space<vmem>>, vector<8x128xf32>
    tpu.vector_store %arg3[%c0_18, %c0_19], %56 {strides = array<i32>} : memref<8x128xf32, #tpu.memory_space<vmem>>, vector<8x128xf32>,
    return
  }
  func.func @transform_0(%arg0: i32) -> (i32, i32) {
    %c0_i32 = arith.constant 0 : i32
    %c0_i32_0 = arith.constant 0 : i32
    return %arg0, %c0_i32 : i32, i32
  }
  func.func @transform_1(%arg0: i32) -> (i32, i32) {
    %c0_i32 = arith.constant 0 : i32
    %c0_i32_0 = arith.constant 0 : i32
    return %arg0, %c0_i32 : i32, i32
  }
  func.func @transform_2(%arg0: i32) -> (i32, i32) {
    %c0_i32 = arith.constant 0 : i32
    %c0_i32_0 = arith.constant 0 : i32
    return %arg0, %c0_i32 : i32, i32
  }
}

</mosaic_0001>

<llo_original>
// kernel: tpu_custom_call.1
$region0: #{tpu_custom_call.1}
  #allocation0 [shape = 'u32[]', space=smem, size = 0x4, offset = 0x4, fixed_abs, tag = 'smem constant byte address 0x4 - core index']
  #allocation1 [shape = 'u32[144,128]{1,0:T(1,128)}', space=vmem, size = 0x12000, scoped, tag = 'internal scratch']
  %s0 = inlined_call_operand.hbm [shape: f32[8,32], index: 0, kind: input, shape index: {}]
  %s1 = inlined_call_operand.hbm [shape: f32[8,32], index: 1, kind: input, shape index: {}]
  %s2 = inlined_call_operand.hbm [shape: f32[8,128], index: 2, kind: output, shape index: {}]
  %s3 = sld [smem:[#allocation0]]
  $region26: #{tpu_custom_call.1} parent=0
    _
  %s5 = ssub.s32 1, %s3
  %s6 = scalar_select 0, %s5, %s3
  $region1: #{tpu_custom_call.1} parent=0
    #allocation2 [shape = 'u8[4096]{0}', space=vmem, size = 0x1000, scoped, tag = 'input window, operand 0, single buffered']
    #allocation3 [shape = 's32[1]{0}', space=sflag, size = 0x4, scoped, tag = 'scoped memory for tpu_custom_call.1']
    #allocation4 [shape = 's32[1]{0}', space=sflag, size = 0x4, scoped, tag = 'scoped memory for tpu_custom_call.1']
    #allocation5 [shape = 'u8[4096]{0}', space=vmem, size = 0x1000, scoped, tag = 'input window, operand 1, single buffered']
    #allocation6 [shape = 's32[1]{0}', space=sflag, size = 0x4, scoped, tag = 'scoped memory for tpu_custom_call.1']
    #allocation7 [shape = 'u8[4096]{0}', space=vmem, size = 0x1000, scoped, tag = 'output window, operand 0, single buffered']
    %7 = vsyncpa [#allocation3], 0
    %8 = vsyncpa [#allocation6], 0
    %9 = vsyncpa [#allocation4], 0
    // Predicated region
    $region2: #{tpu_custom_call.1} parent=1 // pred_check
      _
    $region3: #{tpu_custom_call.1} parent=1 // pred_check_branch
      %11 = sbr.rel (0) target = $region5
    $region4: #{tpu_custom_call.1} parent=1 // pred_region
      %s13 = ssub.s32 128, 128
      %14 = vsyncadd [#allocation3], %s13
      %s16 = sshll.u32 [#allocation2], 4
      %s17 = int_to_ptr.vmem [resolvable:$true] %s16
      %19 = dma.hbm_to_vmem [thread:$0]  %s0, 128, %s17, [#allocation3]
    $region5: #{tpu_custom_call.1} parent=1 // pred_fallthru
      _
    // Predicated region
    $region6: #{tpu_custom_call.1} parent=1 // pred_check
      _
    $region7: #{tpu_custom_call.1} parent=1 // pred_check_branch
      %21 = sbr.rel (0) target = $region9
    $region8: #{tpu_custom_call.1} parent=1 // pred_region
      %s23 = ssub.s32 128, 128
      %24 = vsyncadd [#allocation6], %s23
      %s26 = sshll.u32 [#allocation5], 4
      %s27 = int_to_ptr.vmem [resolvable:$true] %s26
      %29 = dma.hbm_to_vmem [thread:$0]  %s1, 128, %s27, [#allocation6]
    $region9: #{tpu_custom_call.1} parent=1 // pred_fallthru
      _
    // Predicated region
    $region10: #{tpu_custom_call.1} parent=1 // pred_check
      _
    $region11: #{tpu_custom_call.1} parent=1 // pred_check_branch
      %31 = sbr.rel (0) target = $region13
    $region12: #{tpu_custom_call.1} parent=1 // pred_region
      %32 = dma.done [#allocation3], 128
    $region13: #{tpu_custom_call.1} parent=1 // pred_fallthru
      _
    // Predicated region
    $region14: #{tpu_custom_call.1} parent=1 // pred_check
      _
    $region15: #{tpu_custom_call.1} parent=1 // pred_check_branch
      %34 = sbr.rel (0) target = $region17
    $region16: #{tpu_custom_call.1} parent=1 // pred_region
      %35 = dma.done [#allocation6], 128
    $region17: #{tpu_custom_call.1} parent=1 // pred_fallthru
      _
    %v36 = vld [vmem:[#allocation2] sm:$0xff]
    %v37 = vld [vmem:[#allocation5] sm:$0xff]
    %v38 = vsub.f32 %v36, %v37
    %v39 = vand.u32 2147483647, %v38
    %vm40 = vcmask 261120
    %v41 = vsel %vm40, %v39, 0.0
    %42 = vadd.xlane.f32.xlu0 %v41
    %v43 = vpop.xlane.xlu0 %42
    %v44 = vsel %vm40, %v36, 0.0
    %45 = vadd.xlane.f32.xlu0 %v44
    %v46 = vpop.xlane.xlu0 %45
    %v47 = vsel %vm40, %v37, 0.0
    %48 = vadd.xlane.f32.xlu0 %v47
    %v49 = vpop.xlane.xlu0 %48
    %v50 = vlog2.pop %v36
    %v51 = vmul.f32 %v50, 0.6931472
    %v52 = vmul.f32 %v36, %v51
    %v53 = vsel %vm40, %v52, 0.0
    %54 = vadd.xlane.f32.xlu0 %v53
    %v55 = vpop.xlane.xlu0 %54
    %v56 = vlog2.pop %v37
    %v57 = vmul.f32 %v56, 0.6931472
    %v58 = vmul.f32 %v37, %v57
    %v59 = vsel %vm40, %v58, 0.0
    %60 = vadd.xlane.f32.xlu0 %v59
    %v61 = vpop.xlane.xlu0 %60
    %v62 = vmul.f32 %v43, 0.03125
    %v63 = vsub.f32 1.0, %v62
    %v64 = vmul.f32 %v46, %v49
    %v65 = vmul.f32 %v55, %v49
    %v66 = vmul.f32 %v61, %v46
    %v67 = vadd.f32 %v65, %v66
    %v68 = vlog2.pop %v64
    %v69 = vmul.f32 %v68, 0.6931472
    %v70 = vrcp.pop %v64
    %v71 = vmul.f32 %v67, %v70
    %v72 = vsub.f32 %v69, %v71
    %v73 = vmul.f32 %v72, 0.7213475
    %v74 = vsub.f32 %v73, 0.1
    %v75 = vmul.f32 %v74, 0.5
    %v76 = vtanh.pop %v75
    %v77 = vmul.f32 %v76, 0.5
    %v78 = vadd.f32 %v77, 0.5
    %v79 = vmul.f32 %v78, 0.0078125
    %v80 = vmul.f32 %v79, %v63
    %vm81 = vcmask 7168
    %v82 = vsel %vm81, %v80, 0.0
    %83 = vadd.xlane.f32.xlu0 %v82
    %v84 = vpop.xlane.xlu0 %83
    %v85 = vrot.slane %v84, 4
    %v86 = vadd.f32 %v84, %v85
    %v87 = vrot.slane %v86, 2
    %v88 = vadd.f32 %v86, %v87
    %v89 = vrot.slane %v88, 1
    %v90 = vadd.f32 %v88, %v89
    %s91 = vtos %v90
    %v92 = vlaneseq
    %v93 = vshrl.u32 %v92, 7
    %v94 = vlaneseq
    %v95 = vand.u32 %v94, 127
    %vm96 = vcmp.eq.s32.totalorder %v93, 0
    %vm97 = vcmp.eq.s32.totalorder %v95, 0
    %vm98 = vmand %vm96, %vm97
    %v99 = vstv %s91
    %v100 = vsel %vm98, %v99, 0.0
    %101 = vst [vmem:[#allocation7] sm:$0xff] %v100
    // Predicated region
    $region18: #{tpu_custom_call.1} parent=1 // pred_check
      _
    $region19: #{tpu_custom_call.1} parent=1 // pred_check_branch
      %103 = sbr.rel (0) target = $region21
    $region20: #{tpu_custom_call.1} parent=1 // pred_region
      %s105 = ssub.s32 128, 128
      %106 = vsyncadd [#allocation4], %s105
      %s108 = sshll.u32 [#allocation7], 4
      %s109 = int_to_ptr.vmem [resolvable:$true] %s108
      %111 = dma.vmem_to_hbm [thread:$0]  %s109, 128, %s2, [#allocation4]
    $region21: #{tpu_custom_call.1} parent=1 // pred_fallthru
      _
    // Predicated region
    $region22: #{tpu_custom_call.1} parent=1 // pred_check
      _
    $region23: #{tpu_custom_call.1} parent=1 // pred_check_branch
      %113 = sbr.rel (0) target = $region25
    $region24: #{tpu_custom_call.1} parent=1 // pred_region
      %114 = dma.done [#allocation4], 128
    $region25: #{tpu_custom_call.1} parent=1 // pred_fallthru
      _
    %115 = vsyncpa [#allocation3], 1
    %116 = vsyncpa [#allocation6], 1
    %117 = vsyncpa [#allocation4], 1

</llo_original>
